<compile_context>
chip_gen: v6e
topology: v6e:2x2x1
jax: 0.10.0
libtpu: 0.0.40
codegen_flags: <defaults>
</compile_context>

<pallas_src>
import functools

import jax
import jax.numpy as jnp
from jax.experimental import pallas as pl
from jax.experimental.pallas import tpu as pltpu


# ------------------------------ tiling helpers ------------------------------ #
def _round_up(x: int, m: int) -> int:
    return ((x + m - 1) // m) * m


def _pick_batch_tile(batch: int) -> int:
    """Batch-tile selection.

    * batch <= 256: a single resident tile (one grid step; per-step overhead
      dominates this tiny kernel, so don't split small batches).
    * batch  > 256: 512-1024-row tiles (mem-bound kernels reach ~85% of HBM
      roofline at >=512 rows vs ~63% at 256), capped so the grid has at least
      two steps so the "parallel" axis can shard across both TensorCores (v7x).
    """
    if batch <= 256:
        return _round_up(max(batch, 1), 8)
    return max(8, min(1024, _round_up(pl.cdiv(batch, 2), 8)))


# ------------------------------ Pallas kernels ------------------------------ #
def _fused_pi_vf_kernel(feat_ref, pooled_ref, w1t_ref, w1b_ref, b1_ref,
                        w2_ref, b2_ref, o_ref):
    """Fused pi+vf 2-layer tanh MLP.  Weights are bf16; accumulation/bias/tanh f32."""
    xf = feat_ref[...].astype(jnp.bfloat16)       # (tb, d_pi)
    xp = pooled_ref[...].astype(jnp.bfloat16)     # (tb, d_vf)
    # Layer 1: two MXU matmuls into one lane-dense (tb, h_pi+h_vf) f32 hidden.
    # (W1_top = [pi_w1 | 0], W1_bot = [0 | vf_w1] -> results add without mixing.)
    h = (jnp.dot(xf, w1t_ref[...], preferred_element_type=jnp.float32)
         + jnp.dot(xp, w1b_ref[...], preferred_element_type=jnp.float32)
         + b1_ref[...])
    h = jnp.tanh(h)
    # Layer 2: one MXU matmul on the block-diagonal packed W2 -> (tb, o_pi+o_vf).
    y = jnp.dot(h.astype(jnp.bfloat16), w2_ref[...],
                preferred_element_type=jnp.float32) + b2_ref[...]
    o_ref[...] = jnp.tanh(y).astype(o_ref.dtype)


def _mlp2_kernel(x_ref, w1_ref, b1_ref, w2_ref, b2_ref, o_ref):
    """Slim single-network 2-layer tanh MLP (actor-only / critic-only paths)."""
    h = jnp.dot(x_ref[...].astype(jnp.bfloat16), w1_ref[...],
                preferred_element_type=jnp.float32) + b1_ref[...]
    h = jnp.tanh(h)
    y = jnp.dot(h.astype(jnp.bfloat16), w2_ref[...],
                preferred_element_type=jnp.float32) + b2_ref[...]
    o_ref[...] = jnp.tanh(y).astype(o_ref.dtype)


# --------------------------------- wrappers --------------------------------- #
def fused_pi_vf_forward(features, pooled_h, w1_top, w1_bot, b1, w2, b2,
                        *, out_pi_dim, out_vf_dim):
    """One pallas_call computing both latent_pi and latent_vf.

    features: (batch, d_pi) f32        pooled_h: (batch, d_vf) f32
    w1_top:   (d_pi, h_tot) bf16       w1_bot:   (d_vf, h_tot) bf16
    w2:       (h_tot, o_tot) bf16 (block-diagonal)
    b1/b2:    (1, h_tot)/(1, o_tot) f32
    Returns (latent_pi, latent_vf) f32.
    """
    batch, d_pi = features.shape
    d_vf = pooled_h.shape[1]
    h_tot = w1_top.shape[1]
    d_out = w2.shape[1]

    tb = _pick_batch_tile(batch)
    grid = (pl.cdiv(batch, tb),)

    cost = pl.CostEstimate(
        flops=2 * batch * ((d_pi + d_vf) * h_tot + h_tot * d_out),
        transcendentals=batch * (h_tot + d_out),
        bytes_accessed=(4 * batch * (d_pi + d_vf + d_out)
                        + 2 * (w1_top.size + w1_bot.size + w2.size)
                        + 4 * (b1.size + b2.size)),
    )

    out = pl.pallas_call(
        _fused_pi_vf_kernel,
        out_shape=jax.ShapeDtypeStruct((batch, d_out), jnp.float32),
        grid=grid,
        in_specs=[
            pl.BlockSpec((tb, d_pi), lambda i: (i, 0)),       # features tile
            pl.BlockSpec((tb, d_vf), lambda i: (i, 0)),       # pooled_h tile
            pl.BlockSpec(w1_top.shape, lambda i: (0, 0)),     # resident weights
            pl.BlockSpec(w1_bot.shape, lambda i: (0, 0)),
            pl.BlockSpec(b1.shape, lambda i: (0, 0)),
            pl.BlockSpec(w2.shape, lambda i: (0, 0)),
            pl.BlockSpec(b2.shape, lambda i: (0, 0)),
        ],
        out_specs=pl.BlockSpec((tb, d_out), lambda i: (i, 0)),  # lane-dense (tb, 128)
        compiler_params=pltpu.CompilerParams(dimension_semantics=("parallel",)),
        cost_estimate=cost,
    )(features, pooled_h, w1_top, w1_bot, b1, w2, b2)

    # TODO(synk): if downstream consumers can take the packed (batch, 128) output,
    # return it directly and fuse the pi/vf split into them to avoid two XLA slices.
    latent_pi = out[:, :out_pi_dim]
    latent_vf = out[:, out_pi_dim:out_pi_dim + out_vf_dim]
    return latent_pi, latent_vf


def mlp2_forward(x, w1, b1, w2, b2):
    """Single 2-layer tanh MLP as one pallas_call (actor-only / critic-only)."""
    batch, d_in = x.shape
    d_hid = w1.shape[1]
    d_out = w2.shape[1]

    tb = _pick_batch_tile(batch)
    grid = (pl.cdiv(batch, tb),)

    cost = pl.CostEstimate(
        flops=2 * batch * (d_in * d_hid + d_hid * d_out),
        transcendentals=batch * (d_hid + d_out),
        bytes_accessed=(4 * batch * (d_in + d_out)
                        + 2 * (w1.size + w2.size) + 4 * (b1.size + b2.size)),
    )

    return pl.pallas_call(
        _mlp2_kernel,
        out_shape=jax.ShapeDtypeStruct((batch, d_out), jnp.float32),
        grid=grid,
        in_specs=[
            pl.BlockSpec((tb, d_in), lambda i: (i, 0)),
            pl.BlockSpec(w1.shape, lambda i: (0, 0)),
            pl.BlockSpec(b1.shape, lambda i: (0, 0)),
            pl.BlockSpec(w2.shape, lambda i: (0, 0)),
            pl.BlockSpec(b2.shape, lambda i: (0, 0)),
        ],
        out_specs=pl.BlockSpec((tb, d_out), lambda i: (i, 0)),
        compiler_params=pltpu.CompilerParams(dimension_semantics=("parallel",)),
        cost_estimate=cost,
    )(x, w1, b1, w2, b2)


# --------------------------- parameter creation ---------------------------- #
def init_linear_params(key, in_dim, out_dim):
    """Deterministic init mimicking torch.nn.Linear (uniform +-1/sqrt(in_dim))."""
    kw, kb = jax.random.split(key)
    bound = 1.0 / jnp.sqrt(jnp.float32(in_dim))
    # stored as [in, out] == PyTorch weight.T so the kernel does x @ W
    w = jax.random.uniform(kw, (in_dim, out_dim), jnp.float32, -bound, bound)
    b = jax.random.uniform(kb, (1, out_dim), jnp.float32, -bound, bound)
    return w, b


class CustomNetworkPallas:
    """JAX/Pallas re-implementation of CustomNetwork's forward pass (fused kernel)."""

    def __init__(self, net_arch, feature_dim_policy=128, feature_dim_value=64, seed=0):
        if isinstance(net_arch, dict):
            pi_dims = net_arch.get("pi", [])
            vf_dims = net_arch.get("vf", [])
        else:
            pi_dims = vf_dims = net_arch
        assert len(pi_dims) == 2 and len(vf_dims) == 2, \
            "fused Pallas kernel here is written for 2-layer MLPs"
        # TODO(synk): generalize the fused kernel to arbitrary net_arch depth.

        key = jax.random.PRNGKey(seed)
        k = jax.random.split(key, 4)
        # Per-network f32 parameters (exact PyTorch-module semantics), kept as reference.
        self.pi_w1, self.pi_b1 = init_linear_params(k[0], feature_dim_policy, pi_dims[0])
        self.pi_w2, self.pi_b2 = init_linear_params(k[1], pi_dims[0], pi_dims[1])
        self.vf_w1, self.vf_b1 = init_linear_params(k[2], feature_dim_value, vf_dims[0])
        self.vf_w2, self.vf_b2 = init_linear_params(k[3], vf_dims[0], vf_dims[1])
        self.latent_dim_pi = pi_dims[-1]
        self.latent_dim_vf = vf_dims[-1]

        d_pi_in, d_vf_in = feature_dim_policy, feature_dim_value
        h_pi, h_vf = pi_dims[0], vf_dims[0]
        o_pi, o_vf = pi_dims[1], vf_dims[1]
        bf = jnp.bfloat16

        # ---- pack once at init (paid once, not per step) ----
        # Layer-1 weight row-blocks of the block-diagonal W1 (no in-kernel slicing):
        #   W1_top = [pi_w1 | 0]  (d_pi_in, h_pi+h_vf),  W1_bot = [0 | vf_w1] (d_vf_in, ...)
        self.w1_top = jnp.concatenate(
            [self.pi_w1, jnp.zeros((d_pi_in, h_vf), jnp.float32)], axis=1).astype(bf)
        self.w1_bot = jnp.concatenate(
            [jnp.zeros((d_vf_in, h_pi), jnp.float32), self.vf_w1], axis=1).astype(bf)
        self.b1_packed = jnp.concatenate([self.pi_b1, self.vf_b1], axis=1)   # f32

        # Layer-2 block-diagonal packed weight (h_pi+h_vf, o_pi+o_vf).
        w2 = jnp.zeros((h_pi + h_vf, o_pi + o_vf), jnp.float32)
        w2 = w2.at[:h_pi, :o_pi].set(self.pi_w2)
        w2 = w2.at[h_pi:, o_pi:].set(self.vf_w2)
        self.w2_packed = w2.astype(bf)
        self.b2_packed = jnp.concatenate([self.pi_b2, self.vf_b2], axis=1)   # f32

        # bf16 copies of the per-network weights for the slim actor/critic kernels.
        self.pi_w1_bf, self.pi_w2_bf = self.pi_w1.astype(bf), self.pi_w2.astype(bf)
        self.vf_w1_bf, self.vf_w2_bf = self.vf_w1.astype(bf), self.vf_w2.astype(bf)

        # jit the forwards so repeated env steps amortize dispatch.
        self._forward = jax.jit(functools.partial(
            fused_pi_vf_forward,
            out_pi_dim=self.latent_dim_pi, out_vf_dim=self.latent_dim_vf))
        self._mlp2 = jax.jit(mlp2_forward)

    # forward(features, pooled_h) -> (latent_pi, latent_vf), single fused kernel.
    def __call__(self, features, pooled_h):
        return self._forward(features, pooled_h,
                             self.w1_top, self.w1_bot, self.b1_packed,
                             self.w2_packed, self.b2_packed)

    # Standalone actor/critic paths use the slim single-network kernel (no zeros
    # tensor materialized in HBM, no dead-half MXU/EUP work).
    def forward_actor(self, features):
        return self._mlp2(features, self.pi_w1_bf, self.pi_b1,
                          self.pi_w2_bf, self.pi_b2)

    def forward_critic(self, pooled_h):
        return self._mlp2(pooled_h, self.vf_w1_bf, self.vf_b1,
                          self.vf_w2_bf, self.vf_b2)


# ---------------------------------- main ----------------------------------- #
if __name__ == "__main__":
    net = CustomNetworkPallas(net_arch=[64, 64],
                              feature_dim_policy=128,
                              feature_dim_value=64,
                              seed=0)

    key = jax.random.PRNGKey(0)
    k_feat, k_pool = jax.random.split(key)
    batch = 8
    features = jax.random.normal(k_feat, (batch, 128), jnp.float32)   # node features
    pooled_h = jax.random.normal(k_pool, (batch, 64), jnp.float32)    # pooled graph feature

    latent_pi, latent_vf = net(features, pooled_h)
    jax.block_until_ready((latent_pi, latent_vf))

    # Reference matching the kernel's math exactly (bf16 operands, f32 accumulation).
    bf = jnp.bfloat16
    def ref2(x, w1, b1, w2, b2):
        h = jnp.tanh(jnp.dot(x.astype(bf), w1.astype(bf),
                             preferred_element_type=jnp.float32) + b1)
        return jnp.tanh(jnp.dot(h.astype(bf), w2.astype(bf),
                                preferred_element_type=jnp.float32) + b2)
    ref_pi_bf = ref2(features, net.pi_w1, net.pi_b1, net.pi_w2, net.pi_b2)
    ref_vf_bf = ref2(pooled_h, net.vf_w1, net.vf_b1, net.vf_w2, net.vf_b2)

    # Original full-f32 module semantics (documents bf16 weight quantization error).
    ref_pi_f32 = jnp.tanh(jnp.tanh(features @ net.pi_w1 + net.pi_b1) @ net.pi_w2 + net.pi_b2)
    ref_vf_f32 = jnp.tanh(jnp.tanh(pooled_h @ net.vf_w1 + net.vf_b1) @ net.vf_w2 + net.vf_b2)

    assert latent_pi.shape == (batch, net.latent_dim_pi)
    assert latent_vf.shape == (batch, net.latent_dim_vf)
    assert jnp.allclose(latent_pi, ref_pi_bf, atol=1e-3, rtol=1e-3)
    assert jnp.allclose(latent_vf, ref_vf_bf, atol=1e-3, rtol=1e-3)
    assert jnp.allclose(latent_pi, ref_pi_f32, atol=5e-2, rtol=5e-2)
    assert jnp.allclose(latent_vf, ref_vf_f32, atol=5e-2, rtol=5e-2)

    # Exercise the slim single-network paths as well.
    a = net.forward_actor(features)
    c = net.forward_critic(pooled_h)
    jax.block_until_ready((a, c))
    assert jnp.allclose(a, ref_pi_bf, atol=1e-3, rtol=1e-3)
    assert jnp.allclose(c, ref_vf_bf, atol=1e-3, rtol=1e-3)

    print("KERNEL_OK")
</pallas_src>

<mosaic_0001>
module attributes {stable_mosaic.version = 11 : i64} {
  func.func @_fused_pi_vf_kernel(%arg0: i32, %arg1: memref<8x128xf32, #tpu.memory_space<vmem>>, %arg2: memref<8x64xf32, #tpu.memory_space<vmem>>, %arg3: memref<128x128xbf16, #tpu.memory_space<vmem>>, %arg4: memref<64x128xbf16, #tpu.memory_space<vmem>>, %arg5: memref<1x128xf32, #tpu.memory_space<vmem>>, %arg6: memref<128x128xbf16, #tpu.memory_space<vmem>>, %arg7: memref<1x128xf32, #tpu.memory_space<vmem>>, %arg8: memref<8x128xf32, #tpu.memory_space<vmem>>) attributes {dimension_semantics = [#tpu.dimension_semantics<parallel>], iteration_bounds = array<i64: 1>, scalar_prefetch = 0 : i64, scratch_operands = 0 : i64, tpu.core_type = #tpu.core_type<tc>, window_params = [{transform_indices = @transform_0, window_bounds = array<i64: 8, 128>}, {transform_indices = @transform_1, window_bounds = array<i64: 8, 64>}, {pipeline_mode = #tpu.pipeline_mode<synchronous>, transform_indices = @transform_2, window_bounds = array<i64: 128, 128>}, {pipeline_mode = #tpu.pipeline_mode<synchronous>, transform_indices = @transform_3, window_bounds = array<i64: 64, 128>}, {pipeline_mode = #tpu.pipeline_mode<synchronous>, transform_indices = @transform_4, window_bounds = array<i64: 1, 128>}, {pipeline_mode = #tpu.pipeline_mode<synchronous>, transform_indices = @transform_5, window_bounds = array<i64: 128, 128>}, {pipeline_mode = #tpu.pipeline_mode<synchronous>, transform_indices = @transform_6, window_bounds = array<i64: 1, 128>}, {transform_indices = @transform_7, window_bounds = array<i64: 8, 128>}]} {
    %c0 = arith.constant 0 : index
    %c0_0 = arith.constant 0 : index
    %0 = vector.load %arg1[%c0, %c0_0] : memref<8x128xf32, #tpu.memory_space<vmem>>, vector<8x128xf32>
    %1 = arith.truncf %0 : vector<8x128xf32> to vector<8x128xbf16>
    %c0_1 = arith.constant 0 : index
    %c0_2 = arith.constant 0 : index
    %2 = vector.load %arg2[%c0_1, %c0_2] : memref<8x64xf32, #tpu.memory_space<vmem>>, vector<8x64xf32>
    %3 = arith.truncf %2 : vector<8x64xf32> to vector<8x64xbf16>
    %c0_3 = arith.constant 0 : index
    %c0_4 = arith.constant 0 : index
    %4 = vector.load %arg3[%c0_3, %c0_4] : memref<128x128xbf16, #tpu.memory_space<vmem>>, vector<128x128xbf16>
    %cst = arith.constant dense<0.000000e+00> : vector<8x128xf32>
    %5 = tpu.matmul %1, %4, %cst {dimension_numbers = #tpu.dot_dimension_numbers<[1], [0], [0], [1], [0, 0, 1, 1], [], []>} : vector<8x128xbf16>, vector<128x128xbf16>, vector<8x128xf32> -> vector<8x128xf32>
    %c0_5 = arith.constant 0 : index
    %c0_6 = arith.constant 0 : index
    %6 = vector.load %arg4[%c0_5, %c0_6] : memref<64x128xbf16, #tpu.memory_space<vmem>>, vector<64x128xbf16>
    %cst_7 = arith.constant dense<0.000000e+00> : vector<8x128xf32>
    %7 = tpu.matmul %3, %6, %cst_7 {dimension_numbers = #tpu.dot_dimension_numbers<[1], [0], [0], [1], [0, 0, 1, 1], [], []>} : vector<8x64xbf16>, vector<64x128xbf16>, vector<8x128xf32> -> vector<8x128xf32>
    %8 = arith.addf %5, %7 : vector<8x128xf32>
    %c0_8 = arith.constant 0 : index
    %c0_9 = arith.constant 0 : index
    %9 = vector.load %arg5[%c0_8, %c0_9] : memref<1x128xf32, #tpu.memory_space<vmem>>, vector<1x128xf32>
    %10 = vector.broadcast %9 : vector<1x128xf32> to vector<8x128xf32>
    %11 = arith.addf %8, %10 : vector<8x128xf32>
    %12 = math.tanh %11 : vector<8x128xf32>
    %13 = arith.truncf %12 : vector<8x128xf32> to vector<8x128xbf16>
    %c0_10 = arith.constant 0 : index
    %c0_11 = arith.constant 0 : index
    %14 = vector.load %arg6[%c0_10, %c0_11] : memref<128x128xbf16, #tpu.memory_space<vmem>>, vector<128x128xbf16>
    %cst_12 = arith.constant dense<0.000000e+00> : vector<8x128xf32>
    %15 = tpu.matmul %13, %14, %cst_12 {dimension_numbers = #tpu.dot_dimension_numbers<[1], [0], [0], [1], [0, 0, 1, 1], [], []>} : vector<8x128xbf16>, vector<128x128xbf16>, vector<8x128xf32> -> vector<8x128xf32>
    %c0_13 = arith.constant 0 : index
    %c0_14 = arith.constant 0 : index
    %16 = vector.load %arg7[%c0_13, %c0_14] : memref<1x128xf32, #tpu.memory_space<vmem>>, vector<1x128xf32>
    %17 = vector.broadcast %16 : vector<1x128xf32> to vector<8x128xf32>
    %18 = arith.addf %15, %17 : vector<8x128xf32>
    %19 = math.tanh %18 : vector<8x128xf32>
    %c0_15 = arith.constant 0 : index
    %c0_16 = arith.constant 0 : index
    %20 = vector.load %arg8[%c0_15, %c0_16] : memref<8x128xf32, #tpu.memory_space<vmem>>, vector<8x128xf32>
    tpu.vector_store %arg8[%c0_15, %c0_16], %19 {strides = array<i32>} : memref<8x128xf32, #tpu.memory_space<vmem>>, vector<8x128xf32>,
    return
  }
  func.func @transform_0(%arg0: i32) -> (i32, i32) {
    %c0_i32 = arith.constant 0 : i32
    %c0_i32_0 = arith.constant 0 : i32
    return %arg0, %c0_i32 : i32, i32
  }
  func.func @transform_1(%arg0: i32) -> (i32, i32) {
    %c0_i32 = arith.constant 0 : i32
    %c0_i32_0 = arith.constant 0 : i32
    return %arg0, %c0_i32 : i32, i32
  }
  func.func @transform_2(%arg0: i32) -> (i32, i32) {
    %c0_i32 = arith.constant 0 : i32
    %c0_i32_0 = arith.constant 0 : i32
    %c0_i32_1 = arith.constant 0 : i32
    return %c0_i32, %c0_i32_0 : i32, i32
  }
  func.func @transform_3(%arg0: i32) -> (i32, i32) {
    %c0_i32 = arith.constant 0 : i32
    %c0_i32_0 = arith.constant 0 : i32
    %c0_i32_1 = arith.constant 0 : i32
    return %c0_i32, %c0_i32_0 : i32, i32
  }
  func.func @transform_4(%arg0: i32) -> (i32, i32) {
    %c0_i32 = arith.constant 0 : i32
    %c0_i32_0 = arith.constant 0 : i32
    %c0_i32_1 = arith.constant 0 : i32
    return %c0_i32, %c0_i32_0 : i32, i32
  }
  func.func @transform_5(%arg0: i32) -> (i32, i32) {
    %c0_i32 = arith.constant 0 : i32
    %c0_i32_0 = arith.constant 0 : i32
    %c0_i32_1 = arith.constant 0 : i32
    return %c0_i32, %c0_i32_0 : i32, i32
  }
  func.func @transform_6(%arg0: i32) -> (i32, i32) {
    %c0_i32 = arith.constant 0 : i32
    %c0_i32_0 = arith.constant 0 : i32
    %c0_i32_1 = arith.constant 0 : i32
    return %c0_i32, %c0_i32_0 : i32, i32
  }
  func.func @transform_7(%arg0: i32) -> (i32, i32) {
    %c0_i32 = arith.constant 0 : i32
    %c0_i32_0 = arith.constant 0 : i32
    return %arg0, %c0_i32 : i32, i32
  }
}

</mosaic_0001>

<llo_original>
// kernel: fused_pi_vf_forward.1
$region0: #{fused_pi_vf_forward.1}
  #allocation0 [shape = 'u32[]', space=smem, size = 0x4, offset = 0x4, fixed_abs, tag = 'smem constant byte address 0x4 - core index']
  #allocation1 [shape = 'u32[144,128]{1,0:T(1,128)}', space=vmem, size = 0x12000, scoped, tag = 'internal scratch']
  %s0 = inlined_call_operand.hbm [shape: f32[8,128], index: 0, kind: input, shape index: {}]
  %s1 = inlined_call_operand.hbm [shape: f32[8,64], index: 1, kind: input, shape index: {}]
  %s2 = inlined_call_operand.hbm [shape: bf16[128,128], index: 2, kind: input, shape index: {}]
  %s3 = inlined_call_operand.hbm [shape: bf16[64,128], index: 3, kind: input, shape index: {}]
  %s4 = inlined_call_operand.vmem [shape: f32[1,128], index: 4, kind: input, shape index: {}]
  %s5 = inlined_call_operand.hbm [shape: bf16[128,128], index: 5, kind: input, shape index: {}]
  %s6 = inlined_call_operand.vmem [shape: f32[1,128], index: 6, kind: input, shape index: {}]
  %s7 = inlined_call_operand.vmem [shape: f32[8,128], index: 7, kind: output, shape index: {}]
  %s8 = sld [smem:[#allocation0]]
  $region58: #{fused_pi_vf_forward.1} parent=0
    _
  %s10 = ssub.s32 1, %s8
  %s11 = scalar_select 0, %s10, %s8
  $region1: #{fused_pi_vf_forward.1} parent=0
    #allocation2 [shape = 'u8[4096]{0}', space=vmem, size = 0x1000, scoped, tag = 'input window, operand 0, single buffered']
    #allocation3 [shape = 's32[1]{0}', space=sflag, size = 0x4, scoped, tag = 'scoped memory for fused_pi_vf_forward.1']
    #allocation4 [shape = 'u8[4096]{0}', space=vmem, size = 0x1000, scoped, tag = 'input window, operand 1, single buffered']
    #allocation5 [shape = 's32[1]{0}', space=sflag, size = 0x4, scoped, tag = 'scoped memory for fused_pi_vf_forward.1']
    #allocation6 [shape = 'u8[32768]{0}', space=vmem, size = 0x8000, scoped, tag = 'input window, operand 2, single buffered']
    #allocation7 [shape = 'u8[16384]{0}', space=vmem, size = 0x4000, scoped, tag = 'input window, operand 3, single buffered']
    #allocation8 [shape = 's32[1]{0}', space=sflag, size = 0x4, scoped, tag = 'scoped memory for fused_pi_vf_forward.1']
    #allocation9 [shape = 'u8[32768]{0}', space=vmem, size = 0x8000, scoped, tag = 'input window, operand 5, single buffered']
    %12 = vsyncpa [#allocation3], 0
    %13 = vsyncpa [#allocation5], 0
    %14 = vsyncpa [#allocation8], 0
    // Predicated region
    $region2: #{fused_pi_vf_forward.1} parent=1 // pred_check
      _
    $region3: #{fused_pi_vf_forward.1} parent=1 // pred_check_branch
      %16 = sbr.rel (0) target = $region5
    $region4: #{fused_pi_vf_forward.1} parent=1 // pred_region
      %s18 = ssub.s32 128, 128
      %19 = vsyncadd [#allocation3], %s18
      %s21 = sshll.u32 [#allocation2], 4
      %s22 = int_to_ptr.vmem [resolvable:$true] %s21
      %24 = dma.hbm_to_vmem [thread:$0]  %s0, 128, %s22, [#allocation3]
    $region5: #{fused_pi_vf_forward.1} parent=1 // pred_fallthru
      _
    // Predicated region
    $region6: #{fused_pi_vf_forward.1} parent=1 // pred_check
      _
    $region7: #{fused_pi_vf_forward.1} parent=1 // pred_check_branch
      %26 = sbr.rel (0) target = $region9
    $region8: #{fused_pi_vf_forward.1} parent=1 // pred_region
      %s28 = ssub.s32 128, 128
      %29 = vsyncadd [#allocation5], %s28
      %s31 = sshll.u32 [#allocation4], 4
      %s32 = int_to_ptr.vmem [resolvable:$true] %s31
      %34 = dma.hbm_to_vmem [thread:$0]  %s1, 128, %s32, [#allocation5]
    $region9: #{fused_pi_vf_forward.1} parent=1 // pred_fallthru
      _
    // Predicated region
    $region10: #{fused_pi_vf_forward.1} parent=1 // pred_check
      _
    $region11: #{fused_pi_vf_forward.1} parent=1 // pred_check_branch
      %36 = sbr.rel (0) target = $region13
    $region12: #{fused_pi_vf_forward.1} parent=1 // pred_region
      %s38 = ssub.s32 1024, 1024
      %39 = vsyncadd [#allocation5], %s38
      %s40 = sshll.u32 [#allocation6], 4
      %s41 = int_to_ptr.vmem [resolvable:$true] %s40
      %46 = dma.hbm_to_vmem [thread:$0]  %s2, 1024, %s41, [#allocation5], 64, 64, 4
    $region13: #{fused_pi_vf_forward.1} parent=1 // pred_fallthru
      _
    // Predicated region
    $region14: #{fused_pi_vf_forward.1} parent=1 // pred_check
      _
    $region15: #{fused_pi_vf_forward.1} parent=1 // pred_check_branch
      %48 = sbr.rel (0) target = $region17
    $region16: #{fused_pi_vf_forward.1} parent=1 // pred_region
      %s50 = ssub.s32 512, 512
      %51 = vsyncadd [#allocation8], %s50
      %s52 = sshll.u32 [#allocation7], 4
      %s53 = int_to_ptr.vmem [resolvable:$true] %s52
      %58 = dma.hbm_to_vmem [thread:$0]  %s3, 512, %s53, [#allocation8], 64, 64, 4
    $region17: #{fused_pi_vf_forward.1} parent=1 // pred_fallthru
      _
    // Predicated region
    $region18: #{fused_pi_vf_forward.1} parent=1 // pred_check
      _
    $region19: #{fused_pi_vf_forward.1} parent=1 // pred_check_branch
      %60 = sbr.rel (0) target = $region21
    $region20: #{fused_pi_vf_forward.1} parent=1 // pred_region
      _
    $region21: #{fused_pi_vf_forward.1} parent=1 // pred_fallthru
      _
    // Predicated region
    $region22: #{fused_pi_vf_forward.1} parent=1 // pred_check
      _
    $region23: #{fused_pi_vf_forward.1} parent=1 // pred_check_branch
      %62 = sbr.rel (0) target = $region25
    $region24: #{fused_pi_vf_forward.1} parent=1 // pred_region
      %s64 = ssub.s32 1024, 1024
      %65 = vsyncadd [#allocation8], %s64
      %s66 = sshll.u32 [#allocation9], 4
      %s67 = int_to_ptr.vmem [resolvable:$true] %s66
      %72 = dma.hbm_to_vmem [thread:$0]  %s5, 1024, %s67, [#allocation8], 64, 64, 4
    $region25: #{fused_pi_vf_forward.1} parent=1 // pred_fallthru
      _
    // Predicated region
    $region26: #{fused_pi_vf_forward.1} parent=1 // pred_check
      _
    $region27: #{fused_pi_vf_forward.1} parent=1 // pred_check_branch
      %74 = sbr.rel (0) target = $region29
    $region28: #{fused_pi_vf_forward.1} parent=1 // pred_region
      _
    $region29: #{fused_pi_vf_forward.1} parent=1 // pred_fallthru
      _
    // Predicated region
    $region30: #{fused_pi_vf_forward.1} parent=1 // pred_check
      _
    $region31: #{fused_pi_vf_forward.1} parent=1 // pred_check_branch
      %76 = sbr.rel (0) target = $region33
    $region32: #{fused_pi_vf_forward.1} parent=1 // pred_region
      %77 = dma.done [#allocation3], 128
    $region33: #{fused_pi_vf_forward.1} parent=1 // pred_fallthru
      _
    // Predicated region
    $region34: #{fused_pi_vf_forward.1} parent=1 // pred_check
      _
    $region35: #{fused_pi_vf_forward.1} parent=1 // pred_check_branch
      %79 = sbr.rel (0) target = $region37
    $region36: #{fused_pi_vf_forward.1} parent=1 // pred_region
      %80 = dma.done [#allocation5], 128
    $region37: #{fused_pi_vf_forward.1} parent=1 // pred_fallthru
      _
    // Predicated region
    $region38: #{fused_pi_vf_forward.1} parent=1 // pred_check
      _
    $region39: #{fused_pi_vf_forward.1} parent=1 // pred_check_branch
      %82 = sbr.rel (0) target = $region41
    $region40: #{fused_pi_vf_forward.1} parent=1 // pred_region
      %83 = dma.done [#allocation5], 1024
    $region41: #{fused_pi_vf_forward.1} parent=1 // pred_fallthru
      _
    // Predicated region
    $region42: #{fused_pi_vf_forward.1} parent=1 // pred_check
      _
    $region43: #{fused_pi_vf_forward.1} parent=1 // pred_check_branch
      %85 = sbr.rel (0) target = $region45
    $region44: #{fused_pi_vf_forward.1} parent=1 // pred_region
      %86 = dma.done [#allocation8], 512
    $region45: #{fused_pi_vf_forward.1} parent=1 // pred_fallthru
      _
    // Predicated region
    $region46: #{fused_pi_vf_forward.1} parent=1 // pred_check
      _
    $region47: #{fused_pi_vf_forward.1} parent=1 // pred_check_branch
      %88 = sbr.rel (0) target = $region49
    $region48: #{fused_pi_vf_forward.1} parent=1 // pred_region
      %89 = dma.done [#allocation8], 1024
    $region49: #{fused_pi_vf_forward.1} parent=1 // pred_fallthru
      _
    %v91 = vld [vmem:[#allocation2] sm:$0xff]
    %v92 = vpack.c.bf16 %v91, %v91
    %v93 = vld [vmem:[#allocation4] sm:$0xff]
    %v94 = vpack.c.bf16 %v93, %v93
    %v95 = vld [vmem:[#allocation6] sm:$0xf]
    %v96 = vld [vmem:[#allocation6 + $0x4] sm:$0xf]
    %v97 = vld [vmem:[#allocation6 + $0x8] sm:$0xf]
    %v98 = vld [vmem:[#allocation6 + $0xc] sm:$0xf]
    %v99 = vld [vmem:[#allocation6 + $0x10] sm:$0xf]
    %v100 = vld [vmem:[#allocation6 + $0x14] sm:$0xf]
    %v101 = vld [vmem:[#allocation6 + $0x18] sm:$0xf]
    %v102 = vld [vmem:[#allocation6 + $0x1c] sm:$0xf]
    %v103 = vld [vmem:[#allocation6 + $0x20] sm:$0xf]
    %v104 = vld [vmem:[#allocation6 + $0x24] sm:$0xf]
    %v105 = vld [vmem:[#allocation6 + $0x28] sm:$0xf]
    %v106 = vld [vmem:[#allocation6 + $0x2c] sm:$0xf]
    %v107 = vld [vmem:[#allocation6 + $0x30] sm:$0xf]
    %v108 = vld [vmem:[#allocation6 + $0x34] sm:$0xf]
    %v109 = vld [vmem:[#allocation6 + $0x38] sm:$0xf]
    %v110 = vld [vmem:[#allocation6 + $0x3c] sm:$0xf]
    %v111 = vld [vmem:[#allocation7] sm:$0xf]
    %v112 = vld [vmem:[#allocation7 + $0x4] sm:$0xf]
    %v113 = vld [vmem:[#allocation7 + $0x8] sm:$0xf]
    %v114 = vld [vmem:[#allocation7 + $0xc] sm:$0xf]
    %v115 = vld [vmem:[#allocation7 + $0x10] sm:$0xf]
    %v116 = vld [vmem:[#allocation7 + $0x14] sm:$0xf]
    %v117 = vld [vmem:[#allocation7 + $0x18] sm:$0xf]
    %v118 = vld [vmem:[#allocation7 + $0x1c] sm:$0xf]
    %v127 = vunpack.c.l.b16 %v111
    %v128 = vunpack.c.l.b16 %v112
    %v129 = vunpack.c.l.b16 %v113
    %v130 = vunpack.c.l.b16 %v114
    %v131 = vunpack.c.l.b16 %v115
    %v132 = vunpack.c.l.b16 %v116
    %v133 = vunpack.c.l.b16 %v117
    %v134 = vunpack.c.l.b16 %v118
    %v135 = vpack.c.b16 %v128, %v127
    %v136 = vpack.c.b16 %v130, %v129
    %v137 = vpack.c.b16 %v132, %v131
    %v138 = vpack.c.b16 %v134, %v133
    %vm143 = vcmask 523264
    %v145 = vsel %vm143, %v94, 0
    %147 = vmatprep.subr.bf16.mxu0 0
    %148 = vmatpush1.bf16.msra.mxu0 0
    %149 = vmatprep.subr.bf16.mxu0 0
    %150 = vmatpush1.bf16.msra.mxu0 0
    %151 = vmatprep.subr.bf16.mxu0 0
    %152 = vmatpush1.bf16.msra.mxu0 0
    %153 = vmatprep.subr.bf16.mxu0 0
    %154 = vmatpush1.bf16.msra.mxu0 0
    %155 = vmatprep.subr.bf16.mxu0 0
    %156 = vmatpush1.bf16.msra.mxu0 %v138
    %157 = vmatprep.subr.bf16.mxu0 0
    %158 = vmatpush1.bf16.msra.mxu0 %v137
    %159 = vmatprep.subr.bf16.mxu0 0
    %160 = vmatpush1.bf16.msra.mxu0 %v136
    %161 = vmatprep.subr.bf16.mxu0 0
    %162 = vmatpush1.bf16.msra.mxu0 %v135
    %163 = vmatprep.subr.bf16.mxu0 0
    %164 = vmatpush2.bf16.msra.mxu0 0
    %165 = vmatprep.subr.bf16.mxu0 0
    %166 = vmatpush2.bf16.msra.mxu0 0
    %167 = vmatprep.subr.bf16.mxu0 0
    %168 = vmatpush2.bf16.msra.mxu0 0
    %169 = vmatprep.subr.bf16.mxu0 0
    %170 = vmatpush2.bf16.msra.mxu0 0
    %171 = vmatprep.subr.bf16.mxu0 0
    %172 = vmatpush2.bf16.msra.mxu0 0
    %173 = vmatprep.subr.bf16.mxu0 0
    %174 = vmatpush2.bf16.msra.mxu0 0
    %175 = vmatprep.subr.bf16.mxu0 0
    %176 = vmatpush2.bf16.msra.mxu0 0
    %177 = vmatprep.subr.bf16.mxu0 0
    %178 = vmatpush2.bf16.msra.mxu0 0
    %179 = vmatprep.mubr.bf16.mxu0 0
    %180 = vmatmul.mubr.bf16.gmra.mxu0 %v145
    %v181 = vpop.f32.mrf.mxu0
    %v182 = vadd.f32 0.0, %v181
    %v183 = vpop.f32.mrf.mxu0
    %v184 = vpop.f32.mrf.mxu0
    %v185 = vpop.f32.mrf.mxu0
    %186 = vdwg.mxu0
    %v203 = vunpack.c.l.b16 %v95
    %v204 = vunpack.c.l.b16 %v96
    %v205 = vunpack.c.l.b16 %v97
    %v206 = vunpack.c.l.b16 %v98
    %v207 = vunpack.c.l.b16 %v99
    %v208 = vunpack.c.l.b16 %v100
    %v209 = vunpack.c.l.b16 %v101
    %v210 = vunpack.c.l.b16 %v102
    %v211 = vunpack.c.l.b16 %v103
    %v212 = vunpack.c.l.b16 %v104
    %v213 = vunpack.c.l.b16 %v105
    %v214 = vunpack.c.l.b16 %v106
    %v215 = vunpack.c.l.b16 %v107
    %v216 = vunpack.c.l.b16 %v108
    %v217 = vunpack.c.l.b16 %v109
    %v218 = vunpack.c.l.b16 %v110
    %v219 = vpack.c.b16 %v204, %v203
    %v220 = vpack.c.b16 %v206, %v205
    %v221 = vpack.c.b16 %v208, %v207
    %v222 = vpack.c.b16 %v210, %v209
    %v223 = vpack.c.b16 %v212, %v211
    %v224 = vpack.c.b16 %v214, %v213
    %v225 = vpack.c.b16 %v216, %v215
    %v226 = vpack.c.b16 %v218, %v217
    %235 = vmatprep.subr.bf16.mxu0 0
    %236 = vmatpush1.bf16.msra.mxu0 %v226
    %237 = vmatprep.subr.bf16.mxu0 0
    %238 = vmatpush1.bf16.msra.mxu0 %v225
    %239 = vmatprep.subr.bf16.mxu0 0
    %240 = vmatpush1.bf16.msra.mxu0 %v224
    %241 = vmatprep.subr.bf16.mxu0 0
    %242 = vmatpush1.bf16.msra.mxu0 %v223
    %243 = vmatprep.subr.bf16.mxu0 0
    %244 = vmatpush1.bf16.msra.mxu0 %v222
    %245 = vmatprep.subr.bf16.mxu0 0
    %246 = vmatpush1.bf16.msra.mxu0 %v221
    %247 = vmatprep.subr.bf16.mxu0 0
    %248 = vmatpush1.bf16.msra.mxu0 %v220
    %249 = vmatprep.subr.bf16.mxu0 0
    %250 = vmatpush1.bf16.msra.mxu0 %v219
    %251 = vmatprep.subr.bf16.mxu0 0
    %252 = vmatpush2.bf16.msra.mxu0 0
    %253 = vmatprep.subr.bf16.mxu0 0
    %254 = vmatpush2.bf16.msra.mxu0 0
    %255 = vmatprep.subr.bf16.mxu0 0
    %256 = vmatpush2.bf16.msra.mxu0 0
    %257 = vmatprep.subr.bf16.mxu0 0
    %258 = vmatpush2.bf16.msra.mxu0 0
    %259 = vmatprep.subr.bf16.mxu0 0
    %260 = vmatpush2.bf16.msra.mxu0 0
    %261 = vmatprep.subr.bf16.mxu0 0
    %262 = vmatpush2.bf16.msra.mxu0 0
    %263 = vmatprep.subr.bf16.mxu0 0
    %264 = vmatpush2.bf16.msra.mxu0 0
    %265 = vmatprep.subr.bf16.mxu0 0
    %266 = vmatpush2.bf16.msra.mxu0 0
    %267 = vmatprep.mubr.bf16.mxu0 0
    %268 = vmatmul.mubr.bf16.gmra.mxu0 %v92
    %v269 = vpop.f32.mrf.mxu0
    %v270 = vadd.f32 %v182, %v269
    %v271 = vpop.f32.mrf.mxu0
    %v272 = vpop.f32.mrf.mxu0
    %v273 = vpop.f32.mrf.mxu0
    %274 = vdwg.mxu0
    %v275 = vld [vmem:[%s4] sm:$0x1]
    %v277 = vlaneseq
    %v278 = vshrl.u32 %v277, 7
    %v279 = vsub.s32 0, %v278
    %v280 = vrot.slane %v275, %v279
    %v282 = vadd.f32 %v270, %v280
    %v283 = vtanh.pop %v282
    %v284 = vpack.c.bf16 %v283, %v283
    %v285 = vld [vmem:[#allocation9] sm:$0xf]
    %v286 = vld [vmem:[#allocation9 + $0x4] sm:$0xf]
    %v287 = vld [vmem:[#allocation9 + $0x8] sm:$0xf]
    %v288 = vld [vmem:[#allocation9 + $0xc] sm:$0xf]
    %v289 = vld [vmem:[#allocation9 + $0x10] sm:$0xf]
    %v290 = vld [vmem:[#allocation9 + $0x14] sm:$0xf]
    %v291 = vld [vmem:[#allocation9 + $0x18] sm:$0xf]
    %v292 = vld [vmem:[#allocation9 + $0x1c] sm:$0xf]
    %v293 = vld [vmem:[#allocation9 + $0x20] sm:$0xf]
    %v294 = vld [vmem:[#allocation9 + $0x24] sm:$0xf]
    %v295 = vld [vmem:[#allocation9 + $0x28] sm:$0xf]
    %v296 = vld [vmem:[#allocation9 + $0x2c] sm:$0xf]
    %v297 = vld [vmem:[#allocation9 + $0x30] sm:$0xf]
    %v298 = vld [vmem:[#allocation9 + $0x34] sm:$0xf]
    %v299 = vld [vmem:[#allocation9 + $0x38] sm:$0xf]
    %v300 = vld [vmem:[#allocation9 + $0x3c] sm:$0xf]
    %v301 = vld [vmem:[%s6] sm:$0x1]
    %v303 = vlaneseq
    %v304 = vshrl.u32 %v303, 7
    %v305 = vsub.s32 0, %v304
    %v306 = vrot.slane %v301, %v305
    %v324 = vunpack.c.l.b16 %v285
    %v325 = vunpack.c.l.b16 %v286
    %v326 = vunpack.c.l.b16 %v287
    %v327 = vunpack.c.l.b16 %v288
    %v328 = vunpack.c.l.b16 %v289
    %v329 = vunpack.c.l.b16 %v290
    %v330 = vunpack.c.l.b16 %v291
    %v331 = vunpack.c.l.b16 %v292
    %v332 = vunpack.c.l.b16 %v293
    %v333 = vunpack.c.l.b16 %v294
    %v334 = vunpack.c.l.b16 %v295
    %v335 = vunpack.c.l.b16 %v296
    %v336 = vunpack.c.l.b16 %v297
    %v337 = vunpack.c.l.b16 %v298
    %v338 = vunpack.c.l.b16 %v299
    %v339 = vunpack.c.l.b16 %v300
    %v340 = vpack.c.b16 %v325, %v324
    %v341 = vpack.c.b16 %v327, %v326
    %v342 = vpack.c.b16 %v329, %v328
    %v343 = vpack.c.b16 %v331, %v330
    %v344 = vpack.c.b16 %v333, %v332
    %v345 = vpack.c.b16 %v335, %v334
    %v346 = vpack.c.b16 %v337, %v336
    %v347 = vpack.c.b16 %v339, %v338
    %356 = vmatprep.subr.bf16.mxu0 0
    %357 = vmatpush1.bf16.msra.mxu0 %v347
    %358 = vmatprep.subr.bf16.mxu0 0
    %359 = vmatpush1.bf16.msra.mxu0 %v346
    %360 = vmatprep.subr.bf16.mxu0 0
    %361 = vmatpush1.bf16.msra.mxu0 %v345
    %362 = vmatprep.subr.bf16.mxu0 0
    %363 = vmatpush1.bf16.msra.mxu0 %v344
    %364 = vmatprep.subr.bf16.mxu0 0
    %365 = vmatpush1.bf16.msra.mxu0 %v343
    %366 = vmatprep.subr.bf16.mxu0 0
    %367 = vmatpush1.bf16.msra.mxu0 %v342
    %368 = vmatprep.subr.bf16.mxu0 0
    %369 = vmatpush1.bf16.msra.mxu0 %v341
    %370 = vmatprep.subr.bf16.mxu0 0
    %371 = vmatpush1.bf16.msra.mxu0 %v340
    %372 = vmatprep.subr.bf16.mxu0 0
    %373 = vmatpush2.bf16.msra.mxu0 0
    %374 = vmatprep.subr.bf16.mxu0 0
    %375 = vmatpush2.bf16.msra.mxu0 0
    %376 = vmatprep.subr.bf16.mxu0 0
    %377 = vmatpush2.bf16.msra.mxu0 0
    %378 = vmatprep.subr.bf16.mxu0 0
    %379 = vmatpush2.bf16.msra.mxu0 0
    %380 = vmatprep.subr.bf16.mxu0 0
    %381 = vmatpush2.bf16.msra.mxu0 0
    %382 = vmatprep.subr.bf16.mxu0 0
    %383 = vmatpush2.bf16.msra.mxu0 0
    %384 = vmatprep.subr.bf16.mxu0 0
    %385 = vmatpush2.bf16.msra.mxu0 0
    %386 = vmatprep.subr.bf16.mxu0 0
    %387 = vmatpush2.bf16.msra.mxu0 0
    %388 = vmatprep.mubr.bf16.mxu0 0
    %389 = vmatmul.mubr.bf16.gmra.mxu0 %v284
    %v390 = vpop.f32.mrf.mxu0
    %v391 = vadd.f32 %v306, %v390
    %v392 = vpop.f32.mrf.mxu0
    %v393 = vpop.f32.mrf.mxu0
    %v394 = vpop.f32.mrf.mxu0
    %395 = vdwg.mxu0
    %v396 = vtanh.pop %v391
    %397 = vst [vmem:[%s7] sm:$0xff] %v396
    // Predicated region
    $region50: #{fused_pi_vf_forward.1} parent=1 // pred_check
      _
    $region51: #{fused_pi_vf_forward.1} parent=1 // pred_check_branch
      %399 = sbr.rel (0) target = $region53
    $region52: #{fused_pi_vf_forward.1} parent=1 // pred_region
      _
    $region53: #{fused_pi_vf_forward.1} parent=1 // pred_fallthru
      _
    // Predicated region
    $region54: #{fused_pi_vf_forward.1} parent=1 // pred_check
      _
    $region55: #{fused_pi_vf_forward.1} parent=1 // pred_check_branch
      %401 = sbr.rel (0) target = $region57
    $region56: #{fused_pi_vf_forward.1} parent=1 // pred_region
      _
    $region57: #{fused_pi_vf_forward.1} parent=1 // pred_fallthru
      _
    %402 = vsyncpa [#allocation3], 1
    %403 = vsyncpa [#allocation5], 1
    %404 = vsyncpa [#allocation8], 1

</llo_original>
